<compile_context>
chip_gen: v7x
topology: tpu7x:2x2x1
jax: 0.10.0
libtpu: 0.0.40
codegen_flags: <defaults>
</compile_context>

<pallas_src>
import functools
import math

import jax
import jax.numpy as jnp
from jax.experimental import pallas as pl
from jax.experimental.pallas import tpu as pltpu

_VMEM_BUDGET_BYTES = 20 * 1024 * 1024   # per-block working-set target (safe for v7x's 64 MiB)


def _self_attention_kernel(x_ref, w_ref, o_ref, *, key_dim, tile_k, mm_dtype):
    # x_ref: (Bb, S, E) block of batch elements; w_ref: (3, E, K); o_ref: (Bb, S, K)
    block_b, S, E = x_ref.shape
    num_kt = S // tile_k   # static

    # q/k/v projection weights: leading-axis views of the repacked (3, E, K) block (lane-aligned).
    wq, wk, wv = w_ref[0], w_ref[1], w_ref[2]

    # ---- Q projection once per block: wide-M matmul over flattened (Bb*S, E) rows ------------
    x2d = x_ref[...].reshape(block_b * S, E)
    q = jnp.dot(x2d, wq, preferred_element_type=jnp.float32)
    q = q * jnp.float32(1.0 / math.sqrt(key_dim))           # fold 1/sqrt(K) into q (S*K muls)
    q_mm = q.reshape(block_b, S, key_dim).astype(mm_dtype)

    def key_tile_contrib(j, acc):
        # Softmax is over the QUERY axis (torch dim=1), which is fully resident, so each key
        # column normalizes independently within its tile -> no cross-tile softmax state.
        if isinstance(j, int):
            start = j * tile_k
        else:
            start = pl.multiple_of(j * tile_k, tile_k)
        xt = x_ref[:, pl.ds(start, tile_k), :].reshape(block_b * tile_k, E)
        k_t = jnp.dot(xt, wk, preferred_element_type=jnp.float32).reshape(
            block_b, tile_k, key_dim)
        v_t = jnp.dot(xt, wv, preferred_element_type=jnp.float32).reshape(
            block_b, tile_k, key_dim)

        # scores: contract over the head dim of q and k (no explicit k.T / XLU transpose).
        s = jnp.einsum('bqd,bkd->bqk', q_mm, k_t.astype(mm_dtype),
                       preferred_element_type=jnp.float32)            # (Bb, S, Tk), f32
        s = s - jnp.max(s, axis=1, keepdims=True)                     # max over queries
        p = jnp.exp(s)                                                # f32 softmax numerators
        denom = jnp.sum(p, axis=1)                                    # (Bb, Tk): one per key col
        # Exact normalization, folded into v (Tk*K muls) instead of the (S,Tk) prob tile.
        v_scaled = v_t * (1.0 / denom)[:, :, None]                    # (Bb, Tk, K), f32
        return acc + jnp.einsum('bqk,bkd->bqd',
                                p.astype(mm_dtype), v_scaled.astype(mm_dtype),
                                preferred_element_type=jnp.float32)   # (Bb, S, K)

    acc0 = jnp.zeros((block_b, S, key_dim), jnp.float32)
    if num_kt == 1:
        out = key_tile_contrib(0, acc0)
    else:
        out = jax.lax.fori_loop(0, num_kt, key_tile_contrib, acc0, unroll=num_kt <= 8)

    o_ref[...] = out.astype(o_ref.dtype)


def _estimate_vmem_bytes(block_b, S, E, K, tile_k, in_bytes, out_bytes):
    x_blk = block_b * S * E * in_bytes * 2          # double-buffered input block
    o_blk = block_b * S * K * out_bytes * 2         # double-buffered output block
    w_blk = 3 * E * K * in_bytes * 2                # weight block (double-buffered by default)
    q_buf = block_b * S * K * 4 * 2                 # q (f32) + cast copy
    acc = block_b * S * K * 4                       # f32 accumulator
    sc = 2 * block_b * S * tile_k * 4               # scores + probabilities tile
    kv = 3 * block_b * tile_k * K * 4               # k_t, v_t, v_scaled
    return x_blk + o_blk + w_blk + q_buf + acc + sc + kv


def _pick_tile_k(S, max_tile=512):
    """Key-tile size: full S when small, otherwise the largest divisor of S that is a
    multiple of 8 and <= max_tile (falls back to S if none)."""
    if S <= max_tile:
        return S
    for t in range(max_tile, 7, -1):
        if S % t == 0 and t % 8 == 0:
            return t
    return S


def _pick_block_b(B, S, E, K, tile_k, in_bytes, out_bytes, budget_bytes):
    """Largest divisor of B whose per-block VMEM estimate fits the budget, while keeping
    >= 2 grid blocks when B >= 2 (so both v7x TensorCores get work)."""
    cap = B if B < 2 else max(1, B // 2)
    best = 1
    for bb in range(1, cap + 1):
        if B % bb == 0 and _estimate_vmem_bytes(bb, S, E, K, tile_k, in_bytes,
                                                out_bytes) <= budget_bytes:
            best = bb
    return best


def self_attention(x, U, key_dim, *, compute_dtype=None, block_b=None, tile_k=None,
                   vmem_limit_bytes=None):
    """Pallas TPU forward for the SelfAttention module.

    compute_dtype: None -> matmul operands in x.dtype (f32 default);
                   jnp.bfloat16 -> bf16 MXU operands (all generations), f32 accumulation
                   and f32 softmax.
    """
    B, S, E = x.shape
    assert U.shape == (E, 3 * key_dim)
    out_dtype = x.dtype

    # Repack U:(E, 3K) -> (3, E, K) so q/k/v weights are leading-axis slices inside the kernel.
    w3 = jnp.transpose(U.reshape(E, 3, key_dim), (1, 0, 2))

    # Cast matmul operands on the HBM side: halves DMA bytes + VMEM footprint for bf16.
    if compute_dtype is not None:
        x = x.astype(compute_dtype)
        w3 = w3.astype(compute_dtype)
    mm_dtype = x.dtype

    if tile_k is None:
        tile_k = _pick_tile_k(S)
    assert S % tile_k == 0

    in_bytes = jnp.dtype(x.dtype).itemsize
    out_bytes = jnp.dtype(out_dtype).itemsize
    if block_b is None:
        block_b = _pick_block_b(B, S, E, key_dim, tile_k, in_bytes, out_bytes,
                                _VMEM_BUDGET_BYTES)
    assert B % block_b == 0

    est = _estimate_vmem_bytes(block_b, S, E, key_dim, tile_k, in_bytes, out_bytes)
    if vmem_limit_bytes is None:
        # Headroom above the estimate, but never above v7x's 64 MiB physical VMEM per core.
        vmem_limit_bytes = min(64 * 1024 * 1024, max(32 * 1024 * 1024, int(est * 1.5)))

    kernel = functools.partial(_self_attention_kernel, key_dim=key_dim, tile_k=tile_k,
                               mm_dtype=mm_dtype)

    return pl.pallas_call(
        kernel,
        out_shape=jax.ShapeDtypeStruct((B, S, key_dim), out_dtype),
        grid_spec=pltpu.PrefetchScalarGridSpec(
            num_scalar_prefetch=0,
            grid=(B // block_b,),
            in_specs=[
                pl.BlockSpec((block_b, S, E), lambda b: (b, 0, 0)),
                # Constant weight block (index_map never changes across the grid).
                pl.BlockSpec((3, E, key_dim), lambda b: (0, 0, 0)),
            ],
            out_specs=pl.BlockSpec((block_b, S, key_dim), lambda b: (b, 0, 0)),
        ),
        compiler_params=pltpu.CompilerParams(
            dimension_semantics=("parallel",),
            vmem_limit_bytes=vmem_limit_bytes),
    )(x, w3)


def self_attention_ref(x, U, key_dim, compute_dtype=None):
    """Pure-JAX reference mirroring the torch module.  With compute_dtype set, it also mirrors
    the kernel's bf16-operand / f32-accumulation cast points (for a cast-matched comparison)."""
    cd = compute_dtype
    if cd is not None:
        x, U = x.astype(cd), U.astype(cd)
    qkv = jnp.einsum('bse,ef->bsf', x, U, preferred_element_type=jnp.float32)
    q = qkv[..., :key_dim]
    k = qkv[..., key_dim:2 * key_dim]
    v = qkv[..., 2 * key_dim:]
    if cd is not None:
        q, k = q.astype(cd), k.astype(cd)
    scores = jnp.einsum('bqd,bkd->bqk', q, k,
                        preferred_element_type=jnp.float32) / jnp.sqrt(jnp.float32(key_dim))
    A = jax.nn.softmax(scores, axis=1)   # torch F.softmax(..., dim=1) == query axis
    if cd is not None:
        A, v = A.astype(cd), v.astype(cd)
    return jnp.einsum('bqk,bkd->bqd', A, v, preferred_element_type=jnp.float32)


if __name__ == "__main__":
    # Small shapes consistent with the module's forward: (batch, seq, embedding_dim)
    B, S, E, K = 2, 8, 32, 16

    key = jax.random.PRNGKey(0)
    kx, ku = jax.random.split(key)
    x = jax.random.normal(kx, (B, S, E), dtype=jnp.float32)
    # Deterministic stand-in for nn.Parameter(torch.randn(E, 3*K))
    U = jax.random.normal(ku, (E, 3 * K), dtype=jnp.float32)

    # f32 matmul-operand path: exact normalization -> tight tolerance against the reference.
    out = jax.block_until_ready(self_attention(x, U, K))
    ref = self_attention_ref(x, U, K)
    assert out.shape == (B, S, K)
    assert jnp.allclose(out, ref, atol=2e-3, rtol=2e-3), float(jnp.max(jnp.abs(out - ref)))

    # bf16 matmul-operand path (MXU-native on all generations): compare against a cast-matched
    # reference; remaining delta is bf16 operand rounding at different points, so keep it loose.
    out_bf16 = jax.block_until_ready(self_attention(x, U, K, compute_dtype=jnp.bfloat16))
    ref_bf16 = self_attention_ref(x, U, K, compute_dtype=jnp.bfloat16)
    assert out_bf16.shape == (B, S, K)
    assert bool(jnp.all(jnp.isfinite(out_bf16)))
    assert jnp.allclose(out_bf16, ref_bf16, atol=1e-1, rtol=1e-1), \
        float(jnp.max(jnp.abs(out_bf16 - ref_bf16)))

    print("KERNEL_OK")
</pallas_src>

<mosaic_0001>
module attributes {stable_mosaic.version = 11 : i64} {
  func.func @_self_attention_kernel(%arg0: i32, %arg1: memref<1x8x32xf32, #tpu.memory_space<vmem>>, %arg2: memref<3x32x16xf32, #tpu.memory_space<vmem>>, %arg3: memref<1x8x16xf32, #tpu.memory_space<vmem>>) attributes {dimension_semantics = [#tpu.dimension_semantics<parallel>], iteration_bounds = array<i64: 2>, scalar_prefetch = 0 : i64, scratch_operands = 0 : i64, tpu.core_type = #tpu.core_type<tc>, window_params = [{transform_indices = @transform_0, window_bounds = array<i64: 1, 8, 32>}, {pipeline_mode = #tpu.pipeline_mode<synchronous>, transform_indices = @transform_1, window_bounds = array<i64: 3, 32, 16>}, {transform_indices = @transform_2, window_bounds = array<i64: 1, 8, 16>}]} {
    %c0 = arith.constant 0 : index
    %c0_0 = arith.constant 0 : index
    %c0_1 = arith.constant 0 : index
    %0 = vector.load %arg2[%c0, %c0_0, %c0_1] : memref<3x32x16xf32, #tpu.memory_space<vmem>>, vector<1x32x16xf32>
    %1 = vector.shape_cast %0 : vector<1x32x16xf32> to vector<32x16xf32>
    %c1 = arith.constant 1 : index
    %c0_2 = arith.constant 0 : index
    %c0_3 = arith.constant 0 : index
    %2 = vector.load %arg2[%c1, %c0_2, %c0_3] : memref<3x32x16xf32, #tpu.memory_space<vmem>>, vector<1x32x16xf32>
    %3 = vector.shape_cast %2 : vector<1x32x16xf32> to vector<32x16xf32>
    %c2 = arith.constant 2 : index
    %c0_4 = arith.constant 0 : index
    %c0_5 = arith.constant 0 : index
    %4 = vector.load %arg2[%c2, %c0_4, %c0_5] : memref<3x32x16xf32, #tpu.memory_space<vmem>>, vector<1x32x16xf32>
    %5 = vector.shape_cast %4 : vector<1x32x16xf32> to vector<32x16xf32>
    %c0_6 = arith.constant 0 : index
    %c0_7 = arith.constant 0 : index
    %c0_8 = arith.constant 0 : index
    %6 = vector.load %arg1[%c0_6, %c0_7, %c0_8] : memref<1x8x32xf32, #tpu.memory_space<vmem>>, vector<1x8x32xf32>
    %7 = vector.shape_cast %6 : vector<1x8x32xf32> to vector<8x32xf32>
    %cst = arith.constant dense<0.000000e+00> : vector<8x16xf32>
    %8 = tpu.matmul %7, %1, %cst {dimension_numbers = #tpu.dot_dimension_numbers<[1], [0], [0], [1], [0, 0, 1, 1], [], []>} : vector<8x32xf32>, vector<32x16xf32>, vector<8x16xf32> -> vector<8x16xf32>
    %cst_9 = arith.constant 2.500000e-01 : f32
    %9 = vector.broadcast %cst_9 : f32 to vector<8x16xf32>
    %10 = arith.mulf %8, %9 : vector<8x16xf32>
    %11 = vector.shape_cast %10 : vector<8x16xf32> to vector<1x8x16xf32>
    %cst_10 = arith.constant 0.000000e+00 : f32
    %12 = vector.broadcast %cst_10 : f32 to vector<1x8x16xf32>
    %c0_11 = arith.constant 0 : index
    %c0_12 = arith.constant 0 : index
    %c0_13 = arith.constant 0 : index
    %13 = vector.load %arg1[%c0_11, %c0_12, %c0_13] : memref<1x8x32xf32, #tpu.memory_space<vmem>>, vector<1x8x32xf32>
    %14 = vector.shape_cast %13 : vector<1x8x32xf32> to vector<8x32xf32>
    %cst_14 = arith.constant dense<0.000000e+00> : vector<8x16xf32>
    %15 = tpu.matmul %14, %3, %cst_14 {dimension_numbers = #tpu.dot_dimension_numbers<[1], [0], [0], [1], [0, 0, 1, 1], [], []>} : vector<8x32xf32>, vector<32x16xf32>, vector<8x16xf32> -> vector<8x16xf32>
    %16 = vector.shape_cast %15 : vector<8x16xf32> to vector<1x8x16xf32>
    %cst_15 = arith.constant dense<0.000000e+00> : vector<8x16xf32>
    %17 = tpu.matmul %14, %5, %cst_15 {dimension_numbers = #tpu.dot_dimension_numbers<[1], [0], [0], [1], [0, 0, 1, 1], [], []>} : vector<8x32xf32>, vector<32x16xf32>, vector<8x16xf32> -> vector<8x16xf32>
    %18 = vector.shape_cast %17 : vector<8x16xf32> to vector<1x8x16xf32>
    "tpu.trace_start"() <{level = 10 : i32, message = "bqd,bkd->bqk"}> : () -> ()
    %cst_16 = arith.constant dense<0.000000e+00> : vector<1x8x8xf32>
    %19 = tpu.matmul %11, %16, %cst_16 {dimension_numbers = #tpu.dot_dimension_numbers<[2], [2], [1], [1], [0, 0, 0, 1, 1, 1], [0], [0]>} : vector<1x8x16xf32>, vector<1x8x16xf32>, vector<1x8x8xf32> -> vector<1x8x8xf32>
    "tpu.trace_stop"() : () -> ()
    %cst_17 = arith.constant dense<0xFF800000> : vector<1x8xf32>
    %20 = vector.multi_reduction <maximumf>, %19, %cst_17 [1] : vector<1x8x8xf32> to vector<1x8xf32>
    %21 = vector.shape_cast %20 : vector<1x8xf32> to vector<1x1x8xf32>
    %22 = vector.broadcast %21 : vector<1x1x8xf32> to vector<1x8x8xf32>
    %23 = arith.subf %19, %22 : vector<1x8x8xf32>
    %24 = math.exp %23 : vector<1x8x8xf32>
    %cst_18 = arith.constant dense<0.000000e+00> : vector<1x8xf32>
    %25 = vector.multi_reduction <add>, %24, %cst_18 [1] : vector<1x8x8xf32> to vector<1x8xf32>
    %cst_19 = arith.constant 1.000000e+00 : f32
    %26 = vector.broadcast %cst_19 : f32 to vector<1x8xf32>
    %27 = arith.divf %26, %25 : vector<1x8xf32>
    %28 = vector.shape_cast %27 : vector<1x8xf32> to vector<1x8x1xf32>
    %29 = vector.broadcast %28 : vector<1x8x1xf32> to vector<1x8x16xf32>
    %30 = arith.mulf %18, %29 : vector<1x8x16xf32>
    "tpu.trace_start"() <{level = 10 : i32, message = "bqk,bkd->bqd"}> : () -> ()
    %cst_20 = arith.constant dense<0.000000e+00> : vector<1x8x16xf32>
    %31 = tpu.matmul %24, %30, %cst_20 {dimension_numbers = #tpu.dot_dimension_numbers<[2], [1], [1], [2], [0, 0, 0, 1, 1, 2], [0], [0]>} : vector<1x8x8xf32>, vector<1x8x16xf32>, vector<1x8x16xf32> -> vector<1x8x16xf32>
    "tpu.trace_stop"() : () -> ()
    %32 = arith.addf %12, %31 : vector<1x8x16xf32>
    %c0_21 = arith.constant 0 : index
    %c0_22 = arith.constant 0 : index
    %c0_23 = arith.constant 0 : index
    %33 = vector.load %arg3[%c0_21, %c0_22, %c0_23] : memref<1x8x16xf32, #tpu.memory_space<vmem>>, vector<1x8x16xf32>
    tpu.vector_store %arg3[%c0_21, %c0_22, %c0_23], %32 {strides = array<i32>} : memref<1x8x16xf32, #tpu.memory_space<vmem>>, vector<1x8x16xf32>,
    return
  }
  func.func @transform_0(%arg0: i32) -> (i32, i32, i32) {
    %c0_i32 = arith.constant 0 : i32
    %c0_i32_0 = arith.constant 0 : i32
    %c0_i32_1 = arith.constant 0 : i32
    return %arg0, %c0_i32, %c0_i32_0 : i32, i32, i32
  }
  func.func @transform_1(%arg0: i32) -> (i32, i32, i32) {
    %c0_i32 = arith.constant 0 : i32
    %c0_i32_0 = arith.constant 0 : i32
    %c0_i32_1 = arith.constant 0 : i32
    %c0_i32_2 = arith.constant 0 : i32
    return %c0_i32, %c0_i32_0, %c0_i32_1 : i32, i32, i32
  }
  func.func @transform_2(%arg0: i32) -> (i32, i32, i32) {
    %c0_i32 = arith.constant 0 : i32
    %c0_i32_0 = arith.constant 0 : i32
    %c0_i32_1 = arith.constant 0 : i32
    return %arg0, %c0_i32, %c0_i32_0 : i32, i32, i32
  }
}

</mosaic_0001>

<llo_original>
// kernel: tpu_custom_call.1
$region0: #{tpu_custom_call.1}
  #allocation0 [shape = 'u32[]', space=smem, size = 0x4, offset = 0x4, fixed_abs, tag = 'smem constant byte address 0x4 - core index']
  #allocation1 [shape = 'u32[144,128]{1,0:T(1,128)}', space=vmem, size = 0x12000, scoped, tag = 'internal scratch']
  %s0 = inlined_call_operand.vmem [shape: f32[2,8,32], index: 0, kind: input, shape index: {}]
  %s1 = inlined_call_operand.vmem [shape: f32[3,32,16], index: 1, kind: input, shape index: {}]
  %s2 = inlined_call_operand.hbm [shape: f32[2,8,16], index: 2, kind: output, shape index: {}]
  %s3 = sld [smem:[#allocation0]]
  $region41: #{tpu_custom_call.1} parent=0
    _
  %s5 = ssub.s32 1, %s3
  %s6 = scalar_select 0, %s5, %s3
  $region1: #{tpu_custom_call.1} parent=0
    #allocation2 [shape = 'u8[8192]{0}', space=vmem, size = 0x2000, scoped, tag = 'output window, operand 0']
    #allocation3 [shape = 's32[2]{0}', space=sflag, size = 0x8, scoped, tag = 'scoped memory for tpu_custom_call.1']
    %7 = vsyncpa [#allocation3], 0
    %s8 = scalar_lea.sflag [#allocation3], 1
    %9 = vsyncpa %s8, 0
    loop: start=0, step=1, limit=4
    $region2: #{tpu_custom_call.1} parent=1 // loop_pre_header
      _
    $region3: #{tpu_custom_call.1} parent=1 // loop_header
      %s11 = sphi 0, %s15
      %p12 = scmp.ge.s32.totalorder %s11, 4
      %s21 = sphi 0, %s23
      %s24 = sphi 0, %s21
      %s25 = sphi 0, %s24
      %s41 = sphi 0, %s25
      %s45 = sphi 0, %s45
      %s47 = sphi 0, %s45
      %s48 = sphi 0, %s47
      %s62 = sphi 0, %s48
      %s68 = sphi 0, %s70
      %s71 = sphi 0, %s68
      %s72 = sphi 0, %s71
      %s88 = sphi 0, %s72
    $region4: #{tpu_custom_call.1} parent=1 // loop_header_branch
      %14 = sbr.rel (%p12) target = $region8
    $region5: #{tpu_custom_call.1} parent=1 // loop_body
      %s16 = ssub.s32 %s11, 1
      %s17 = ssub.s32 %s11, 2
      %s18 = sadd.s32 %s11, 1
      %s19 = ssub.s32 %s11, %s18
      %p20 = scmp.eq.s32.totalorder %s19, 0
      %s22 = sadd.s32 %s21, 1
      %s23 = scalar_select %p20, %s21, %s22
      %p26 = pneg %p20
      %p27 = scmp.eq.s32.totalorder %s11, 1
      %p28 = por %p26, %p27
      %p29 = scmp.ne.s32.totalorder %s21, %s24
      %p30 = scmp.eq.s32.totalorder %s11, 0
      %p31 = por %p29, %p30
      %p32 = scmp.ne.s32.totalorder %s21, %s24
      %p33 = scmp.eq.s32.totalorder %s16, 1
      %p34 = por %p32, %p33
      %p35 = scmp.ne.s32.totalorder %s24, %s25
      %p36 = scmp.eq.s32.totalorder %s16, 0
      %p37 = por %p35, %p36
      %p38 = scmp.ne.s32.totalorder %s24, %s25
      %p39 = scmp.eq.s32.totalorder %s17, 1
      %p40 = por %p38, %p39
      %p42 = scmp.ne.s32.totalorder %s25, %s41
      %p43 = scmp.eq.s32.totalorder %s17, 0
      %p44 = por %p42, %p43
      %s46 = sadd.s32 %s45, 1
      %p49 = scmp.eq.s32.totalorder %s11, 1
      %p50 = scmp.ne.s32.totalorder %s45, %s47
      %p51 = scmp.eq.s32.totalorder %s11, 0
      %p52 = por %p50, %p51
      %p53 = scmp.ne.s32.totalorder %s45, %s47
      %p54 = scmp.eq.s32.totalorder %s16, 1
      %p55 = por %p53, %p54
      %p56 = scmp.ne.s32.totalorder %s47, %s48
      %p57 = scmp.eq.s32.totalorder %s16, 0
      %p58 = por %p56, %p57
      %p59 = scmp.ne.s32.totalorder %s47, %s48
      %p60 = scmp.eq.s32.totalorder %s17, 1
      %p61 = por %p59, %p60
      %p63 = scmp.ne.s32.totalorder %s48, %s62
      %p64 = scmp.eq.s32.totalorder %s17, 0
      %p65 = por %p63, %p64
      %s66 = ssub.s32 %s11, %s18
      %p67 = scmp.eq.s32.totalorder %s66, 0
      %s69 = sadd.s32 %s68, 1
      %s70 = scalar_select %p67, %s68, %s69
      %p73 = pneg %p67
      %p74 = scmp.eq.s32.totalorder %s11, 1
      %p75 = por %p73, %p74
      %p76 = scmp.ne.s32.totalorder %s68, %s71
      %p77 = scmp.eq.s32.totalorder %s11, 0
      %p78 = por %p76, %p77
      %p79 = scmp.ne.s32.totalorder %s68, %s71
      %p80 = scmp.eq.s32.totalorder %s16, 1
      %p81 = por %p79, %p80
      %p82 = scmp.ne.s32.totalorder %s71, %s72
      %p83 = scmp.eq.s32.totalorder %s16, 0
      %p84 = por %p82, %p83
      %p85 = scmp.ne.s32.totalorder %s71, %s72
      %p86 = scmp.eq.s32.totalorder %s17, 1
      %p87 = por %p85, %p86
      %p89 = scmp.ne.s32.totalorder %s72, %s88
      %p90 = scmp.eq.s32.totalorder %s17, 0
      %p91 = por %p89, %p90
      %p92 = scmp.le.s32.totalorder 1, %s11
      %p93 = scmp.lt.s32.totalorder %s11, 3
      %p94 = pnand %p92, %p93
      %p95 = pneg %p94
      // Predicated region
      $region9: #{tpu_custom_call.1} parent=5 // pred_check
        _
      $region10: #{tpu_custom_call.1} parent=5 // pred_check_branch
        %97 = sbr.rel (%p94) target = $region12
      $region11: #{tpu_custom_call.1} parent=5 // pred_region
        %s98 = ssub.s32 %s11, 1
        // Predicated region
        $region13: #{tpu_custom_call.1} parent=11 // pred_check
          %p99 = pneg %p58
        $region14: #{tpu_custom_call.1} parent=11 // pred_check_branch
          %101 = sbr.rel (%p99) target = $region16
        $region15: #{tpu_custom_call.1} parent=11 // pred_region
          _
        $region16: #{tpu_custom_call.1} parent=11 // pred_fallthru
          _
      $region12: #{tpu_custom_call.1} parent=5 // pred_fallthru
        _
      %p102 = scmp.lt.s32.totalorder %s11, 2
      // Predicated region
      $region17: #{tpu_custom_call.1} parent=5 // pred_check
        %p103 = pneg %p102
      $region18: #{tpu_custom_call.1} parent=5 // pred_check_branch
        %105 = sbr.rel (%p103) target = $region20
      $region19: #{tpu_custom_call.1} parent=5 // pred_region
        // Predicated region
        $region21: #{tpu_custom_call.1} parent=19 // pred_check
          %p106 = pneg %p31
        $region22: #{tpu_custom_call.1} parent=19 // pred_check_branch
          %108 = sbr.rel (%p106) target = $region24
        $region23: #{tpu_custom_call.1} parent=19 // pred_region
          %p109 = scmp.lt.s32.totalorder %s11, 1
          %s110 = scalar_select %p109, %s11, 1
          %s111 = smul.addr %s110, 8
          %s112 = scalar_lea.vmem %s0, %s111
        $region24: #{tpu_custom_call.1} parent=19 // pred_fallthru
          _
      $region20: #{tpu_custom_call.1} parent=5 // pred_fallthru
        _
      %p113 = scmp.le.s32.totalorder 1, %s11
      %p114 = scmp.lt.s32.totalorder %s11, 3
      %p115 = pnand %p113, %p114
      %p116 = pneg %p115
      // Predicated region
      $region25: #{tpu_custom_call.1} parent=5 // pred_check
        _
      $region26: #{tpu_custom_call.1} parent=5 // pred_check_branch
        %118 = sbr.rel (%p115) target = $region28
      $region27: #{tpu_custom_call.1} parent=5 // pred_region
        %s119 = ssub.s32 %s11, 1
        %p120 = scmp.lt.s32.totalorder %s16, 1
        %s121 = scalar_select %p120, %s16, 1
        %s122 = smul.addr %s121, 8
        %s123 = scalar_lea.vmem %s0, %s122
        %p124 = pneg %p37
        %p125 = pneg %p34
        %p126 = pneg %p58
        %p127 = pneg %p55
        %p128 = pneg %p84
        %p129 = pneg %p81
        %s130 = sand.u32 %s71, 1
        %s131 = scalar_lea.sflag [#allocation3], %s130
        %s132 = sand.u32 %s71, 1
        %s133 = smul.addr %s132, 8
        %s134 = scalar_lea.vmem [#allocation2], %s133
        %p135 = scmp.lt.s32.totalorder %s16, 1
        %s136 = scalar_select %p135, %s16, 1
        %s137 = smul.addr %s136, 8
        %s138 = scalar_lea.vmem %s0, %s137
        %v139 = vld [vmem:[%s1] sm:$0xff]
        %v140 = vld [vmem:[%s1 + $0x8] sm:$0xff]
        %v141 = vld [vmem:[%s1 + $0x10] sm:$0xff]
        %v142 = vld [vmem:[%s1 + $0x18] sm:$0xff]
        %s143 = scalar_lea.vmem %s1, 32
        %v144 = vld [vmem:[%s143] sm:$0xff]
        %v145 = vld [vmem:[%s143 + $0x8] sm:$0xff]
        %v146 = vld [vmem:[%s143 + $0x10] sm:$0xff]
        %v147 = vld [vmem:[%s143 + $0x18] sm:$0xff]
        %s148 = scalar_lea.vmem %s1, 64
        %v149 = vld [vmem:[%s148] sm:$0xff]
        %v150 = vld [vmem:[%s148 + $0x8] sm:$0xff]
        %v151 = vld [vmem:[%s148 + $0x10] sm:$0xff]
        %v152 = vld [vmem:[%s148 + $0x18] sm:$0xff]
        %v153 = vld [vmem:[%s138] sm:$0xff]
        %vm154 = vcmask 261120
        %v156 = vsel %vm154, %v153, 0
        %158 = vmatprep.subr.mxu0 0.0
        %159 = vmatpush1.msra.mxu0 %v139
        %160 = vmatprep.subr.mxu0 0.0
        %161 = vmatpush1.msra.mxu0 %v140
        %162 = vmatprep.subr.mxu0 0.0
        %163 = vmatpush1.msra.mxu0 %v141
        %164 = vmatprep.subr.mxu0 0.0
        %165 = vmatpush1.msra.mxu0 %v142
        %166 = vmatprep.subr.mxu0 0.0
        %167 = vmatpush1.msra.mxu0 0.0
        %168 = vmatprep.subr.mxu0 0.0
        %169 = vmatpush1.msra.mxu0 0.0
        %170 = vmatprep.subr.mxu0 0.0
        %171 = vmatpush1.msra.mxu0 0.0
        %172 = vmatprep.subr.mxu0 0.0
        %173 = vmatpush1.msra.mxu0 0.0
        %174 = vmatprep.subr.mxu0 0.0
        %175 = vmatpush1.msra.mxu0 0.0
        %176 = vmatprep.subr.mxu0 0.0
        %177 = vmatpush1.msra.mxu0 0.0
        %178 = vmatprep.subr.mxu0 0.0
        %179 = vmatpush1.msra.mxu0 0.0
        %180 = vmatprep.subr.mxu0 0.0
        %181 = vmatpush1.msra.mxu0 0.0
        %182 = vmatprep.subr.mxu0 0.0
        %183 = vmatpush1.msra.mxu0 0.0
        %184 = vmatprep.subr.mxu0 0.0
        %185 = vmatpush1.msra.mxu0 0.0
        %186 = vmatprep.subr.mxu0 0.0
        %187 = vmatpush1.msra.mxu0 0.0
        %188 = vmatprep.subr.mxu0 0.0
        %189 = vmatpush1.msra.mxu0 0.0
        %190 = vmatprep.subr.mxu0 0.0
        %191 = vmatpush1.msra.mxu0 0.0
        %192 = vmatprep.subr.mxu0 0.0
        %193 = vmatpush1.msra.mxu0 0.0
        %194 = vmatprep.subr.mxu0 0.0
        %195 = vmatpush1.msra.mxu0 0.0
        %196 = vmatprep.subr.mxu0 0.0
        %197 = vmatpush1.msra.mxu0 0.0
        %198 = vmatprep.subr.mxu0 0.0
        %199 = vmatpush1.msra.mxu0 0.0
        %200 = vmatprep.subr.mxu0 0.0
        %201 = vmatpush1.msra.mxu0 0.0
        %202 = vmatprep.subr.mxu0 0.0
        %203 = vmatpush1.msra.mxu0 0.0
        %204 = vmatprep.subr.mxu0 0.0
        %205 = vmatpush1.msra.mxu0 0.0
        %206 = vmatprep.subr.mxu0 0.0
        %207 = vmatpush1.msra.mxu0 0.0
        %208 = vmatprep.subr.mxu0 0.0
        %209 = vmatpush1.msra.mxu0 0.0
        %210 = vmatprep.subr.mxu0 0.0
        %211 = vmatpush1.msra.mxu0 0.0
        %212 = vmatprep.subr.mxu0 0.0
        %213 = vmatpush1.msra.mxu0 0.0
        %214 = vmatprep.subr.mxu0 0.0
        %215 = vmatpush1.msra.mxu0 0.0
        %216 = vmatprep.subr.mxu0 0.0
        %217 = vmatpush1.msra.mxu0 0.0
        %218 = vmatprep.subr.mxu0 0.0
        %219 = vmatpush1.msra.mxu0 0.0
        %220 = vmatprep.subr.mxu0 0.0
        %221 = vmatpush1.msra.mxu0 0.0
        %222 = vmatprep.mubr.f32.mxu0 0.0
        %223 = vmatmul.mubr.f32.gmra.mrb[0].mxu0 %v156
        %v224 = vpop.f32.mrb[0].mxu0
        %v225 = vadd.f32 0.0, %v224
        %v226 = vpop.f32.mrb[0].mxu0
        %227 = vdwg.mxu0
        %v228 = vmul.f32 %v225, 0.25
        %229 = vmatprep.subr.mxu0 0.0
        %230 = vmatpush1.msra.mxu0 %v144
        %231 = vmatprep.subr.mxu0 0.0
        %232 = vmatpush1.msra.mxu0 %v145
        %233 = vmatprep.subr.mxu0 0.0
        %234 = vmatpush1.msra.mxu0 %v146
        %235 = vmatprep.subr.mxu0 0.0
        %236 = vmatpush1.msra.mxu0 %v147
        %237 = vmatprep.subr.mxu0 0.0
        %238 = vmatpush1.msra.mxu0 0.0
        %239 = vmatprep.subr.mxu0 0.0
        %240 = vmatpush1.msra.mxu0 0.0
        %241 = vmatprep.subr.mxu0 0.0
        %242 = vmatpush1.msra.mxu0 0.0
        %243 = vmatprep.subr.mxu0 0.0
        %244 = vmatpush1.msra.mxu0 0.0
        %245 = vmatprep.subr.mxu0 0.0
        %246 = vmatpush1.msra.mxu0 0.0
        %247 = vmatprep.subr.mxu0 0.0
        %248 = vmatpush1.msra.mxu0 0.0
        %249 = vmatprep.subr.mxu0 0.0
        %250 = vmatpush1.msra.mxu0 0.0
        %251 = vmatprep.subr.mxu0 0.0
        %252 = vmatpush1.msra.mxu0 0.0
        %253 = vmatprep.subr.mxu0 0.0
        %254 = vmatpush1.msra.mxu0 0.0
        %255 = vmatprep.subr.mxu0 0.0
        %256 = vmatpush1.msra.mxu0 0.0
        %257 = vmatprep.subr.mxu0 0.0
        %258 = vmatpush1.msra.mxu0 0.0
        %259 = vmatprep.subr.mxu0 0.0
        %260 = vmatpush1.msra.mxu0 0.0
        %261 = vmatprep.subr.mxu0 0.0
        %262 = vmatpush1.msra.mxu0 0.0
        %263 = vmatprep.subr.mxu0 0.0
        %264 = vmatpush1.msra.mxu0 0.0
        %265 = vmatprep.subr.mxu0 0.0
        %266 = vmatpush1.msra.mxu0 0.0
        %267 = vmatprep.subr.mxu0 0.0
        %268 = vmatpush1.msra.mxu0 0.0
        %269 = vmatprep.subr.mxu0 0.0
        %270 = vmatpush1.msra.mxu0 0.0
        %271 = vmatprep.subr.mxu0 0.0
        %272 = vmatpush1.msra.mxu0 0.0
        %273 = vmatprep.subr.mxu0 0.0
        %274 = vmatpush1.msra.mxu0 0.0
        %275 = vmatprep.subr.mxu0 0.0
        %276 = vmatpush1.msra.mxu0 0.0
        %277 = vmatprep.subr.mxu0 0.0
        %278 = vmatpush1.msra.mxu0 0.0
        %279 = vmatprep.subr.mxu0 0.0
        %280 = vmatpush1.msra.mxu0 0.0
        %281 = vmatprep.subr.mxu0 0.0
        %282 = vmatpush1.msra.mxu0 0.0
        %283 = vmatprep.subr.mxu0 0.0
        %284 = vmatpush1.msra.mxu0 0.0
        %285 = vmatprep.subr.mxu0 0.0
        %286 = vmatpush1.msra.mxu0 0.0
        %287 = vmatprep.subr.mxu0 0.0
        %288 = vmatpush1.msra.mxu0 0.0
        %289 = vmatprep.subr.mxu0 0.0
        %290 = vmatpush1.msra.mxu0 0.0
        %291 = vmatprep.subr.mxu0 0.0
        %292 = vmatpush1.msra.mxu0 0.0
        %293 = vmatprep.mubr.f32.mxu0 0.0
        %294 = vmatmul.mubr.f32.gmra.mrb[0].mxu0 %v156
        %v295 = vpop.f32.mrb[0].mxu0
        %v296 = vadd.f32 0.0, %v295
        %v297 = vpop.f32.mrb[0].mxu0
        %298 = vdwg.mxu0
        %299 = vmatprep.subr.mxu0 0.0
        %300 = vmatpush1.msra.mxu0 %v149
        %301 = vmatprep.subr.mxu0 0.0
        %302 = vmatpush1.msra.mxu0 %v150
        %303 = vmatprep.subr.mxu0 0.0
        %304 = vmatpush1.msra.mxu0 %v151
        %305 = vmatprep.subr.mxu0 0.0
        %306 = vmatpush1.msra.mxu0 %v152
        %307 = vmatprep.subr.mxu0 0.0
        %308 = vmatpush1.msra.mxu0 0.0
        %309 = vmatprep.subr.mxu0 0.0
        %310 = vmatpush1.msra.mxu0 0.0
        %311 = vmatprep.subr.mxu0 0.0
        %312 = vmatpush1.msra.mxu0 0.0
        %313 = vmatprep.subr.mxu0 0.0
        %314 = vmatpush1.msra.mxu0 0.0
        %315 = vmatprep.subr.mxu0 0.0
        %316 = vmatpush1.msra.mxu0 0.0
        %317 = vmatprep.subr.mxu0 0.0
        %318 = vmatpush1.msra.mxu0 0.0
        %319 = vmatprep.subr.mxu0 0.0
        %320 = vmatpush1.msra.mxu0 0.0
        %321 = vmatprep.subr.mxu0 0.0
        %322 = vmatpush1.msra.mxu0 0.0
        %323 = vmatprep.subr.mxu0 0.0
        %324 = vmatpush1.msra.mxu0 0.0
        %325 = vmatprep.subr.mxu0 0.0
        %326 = vmatpush1.msra.mxu0 0.0
        %327 = vmatprep.subr.mxu0 0.0
        %328 = vmatpush1.msra.mxu0 0.0
        %329 = vmatprep.subr.mxu0 0.0
        %330 = vmatpush1.msra.mxu0 0.0
        %331 = vmatprep.subr.mxu0 0.0
        %332 = vmatpush1.msra.mxu0 0.0
        %333 = vmatprep.subr.mxu0 0.0
        %334 = vmatpush1.msra.mxu0 0.0
        %335 = vmatprep.subr.mxu0 0.0
        %336 = vmatpush1.msra.mxu0 0.0
        %337 = vmatprep.subr.mxu0 0.0
        %338 = vmatpush1.msra.mxu0 0.0
        %339 = vmatprep.subr.mxu0 0.0
        %340 = vmatpush1.msra.mxu0 0.0
        %341 = vmatprep.subr.mxu0 0.0
        %342 = vmatpush1.msra.mxu0 0.0
        %343 = vmatprep.subr.mxu0 0.0
        %344 = vmatpush1.msra.mxu0 0.0
        %345 = vmatprep.subr.mxu0 0.0
        %346 = vmatpush1.msra.mxu0 0.0
        %347 = vmatprep.subr.mxu0 0.0
        %348 = vmatpush1.msra.mxu0 0.0
        %349 = vmatprep.subr.mxu0 0.0
        %350 = vmatpush1.msra.mxu0 0.0
        %351 = vmatprep.subr.mxu0 0.0
        %352 = vmatpush1.msra.mxu0 0.0
        %353 = vmatprep.subr.mxu0 0.0
        %354 = vmatpush1.msra.mxu0 0.0
        %355 = vmatprep.subr.mxu0 0.0
        %356 = vmatpush1.msra.mxu0 0.0
        %357 = vmatprep.subr.mxu0 0.0
        %358 = vmatpush1.msra.mxu0 0.0
        %359 = vmatprep.subr.mxu0 0.0
        %360 = vmatpush1.msra.mxu0 0.0
        %361 = vmatprep.subr.mxu0 0.0
        %362 = vmatpush1.msra.mxu0 0.0
        %363 = vmatprep.mubr.f32.mxu0 0.0
        %364 = vmatmul.mubr.f32.gmra.mrb[0].mxu0 %v156
        %v365 = vpop.f32.mrb[0].mxu0
        %v366 = vadd.f32 0.0, %v365
        %v367 = vpop.f32.mrb[0].mxu0
        %368 = vdwg.mxu0
        %vm369 = vcmask 130048
        %v371 = vsel %vm369, %v228, 0
        %v374 = vsel %vm369, %v296, 0
        %376 = vmatprep.subr.mxu0 0.0
        %377 = vmatpush1.xpose.msra.mxu0 %v374
        %378 = vmatprep.subr.mxu0 0.0
        %379 = vmatpush1.xpose.msra.mxu0 0.0
        %380 = vmatprep.subr.mxu0 0.0
        %381 = vmatpush1.xpose.msra.mxu0 0.0
        %382 = vmatprep.subr.mxu0 0.0
        %383 = vmatpush1.xpose.msra.mxu0 0.0
        %384 = vmatprep.subr.mxu0 0.0
        %385 = vmatpush1.xpose.msra.mxu0 0.0
        %386 = vmatprep.subr.mxu0 0.0
        %387 = vmatpush1.xpose.msra.mxu0 0.0
        %388 = vmatprep.subr.mxu0 0.0
        %389 = vmatpush1.xpose.msra.mxu0 0.0
        %390 = vmatprep.subr.mxu0 0.0
        %391 = vmatpush1.xpose.msra.mxu0 0.0
        %392 = vmatprep.subr.mxu0 0.0
        %393 = vmatpush1.xpose.msra.mxu0 0.0
        %394 = vmatprep.subr.mxu0 0.0
        %395 = vmatpush1.xpose.msra.mxu0 0.0
        %396 = vmatprep.subr.mxu0 0.0
        %397 = vmatpush1.xpose.msra.mxu0 0.0
        %398 = vmatprep.subr.mxu0 0.0
        %399 = vmatpush1.xpose.msra.mxu0 0.0
        %400 = vmatprep.subr.mxu0 0.0
        %401 = vmatpush1.xpose.msra.mxu0 0.0
        %402 = vmatprep.subr.mxu0 0.0
        %403 = vmatpush1.xpose.msra.mxu0 0.0
        %404 = vmatprep.subr.mxu0 0.0
        %405 = vmatpush1.xpose.msra.mxu0 0.0
        %406 = vmatprep.subr.mxu0 0.0
        %407 = vmatpush1.xpose.msra.mxu0 0.0
        %408 = vmatprep.subr.mxu0 0.0
        %409 = vmatpush1.xpose.msra.mxu0 0.0
        %410 = vmatprep.subr.mxu0 0.0
        %411 = vmatpush1.xpose.msra.mxu0 0.0
        %412 = vmatprep.subr.mxu0 0.0
        %413 = vmatpush1.xpose.msra.mxu0 0.0
        %414 = vmatprep.subr.mxu0 0.0
        %415 = vmatpush1.xpose.msra.mxu0 0.0
        %416 = vmatprep.subr.mxu0 0.0
        %417 = vmatpush1.xpose.msra.mxu0 0.0
        %418 = vmatprep.subr.mxu0 0.0
        %419 = vmatpush1.xpose.msra.mxu0 0.0
        %420 = vmatprep.subr.mxu0 0.0
        %421 = vmatpush1.xpose.msra.mxu0 0.0
        %422 = vmatprep.subr.mxu0 0.0
        %423 = vmatpush1.xpose.msra.mxu0 0.0
        %424 = vmatprep.subr.mxu0 0.0
        %425 = vmatpush1.xpose.msra.mxu0 0.0
        %426 = vmatprep.subr.mxu0 0.0
        %427 = vmatpush1.xpose.msra.mxu0 0.0
        %428 = vmatprep.subr.mxu0 0.0
        %429 = vmatpush1.xpose.msra.mxu0 0.0
        %430 = vmatprep.subr.mxu0 0.0
        %431 = vmatpush1.xpose.msra.mxu0 0.0
        %432 = vmatprep.subr.mxu0 0.0
        %433 = vmatpush1.xpose.msra.mxu0 0.0
        %434 = vmatprep.subr.mxu0 0.0
        %435 = vmatpush1.xpose.msra.mxu0 0.0
        %436 = vmatprep.subr.mxu0 0.0
        %437 = vmatpush1.xpose.msra.mxu0 0.0
        %438 = vmatprep.subr.mxu0 0.0
        %439 = vmatpush1.xpose.msra.mxu0 0.0
        %440 = vmatprep.mubr.f32.mxu0 0.0
        %441 = vmatmul.mubr.f32.gmra.mrb[0].mxu0 %v371
        %v442 = vpop.f32.mrb[0].mxu0
        %v443 = vadd.f32 0.0, %v442
        %v444 = vpop.f32.mrb[0].mxu0
        %445 = vdwg.mxu0
        %vm446 = vcmask 64512
        %v447 = vsel %vm446, %v443, -inf
        %v448 = vrot.slane %v447, 4
        %v449 = vmax.f32 %v447, %v448
        %v450 = vrot.slane %v449, 2
        %v451 = vmax.f32 %v449, %v450
        %v452 = vrot.slane %v451, 1
        %v453 = vmax.f32 %v451, %v452
        %v454 = vsub.f32 %v443, %v453
        %v455 = vmul.f32 %v454, 1.442695
        %v456 = vpow.pop %v455
        %v457 = vsel %vm446, %v456, 0.0
        %v458 = vrot.slane %v457, 4
        %v459 = vadd.f32 %v457, %v458
        %v460 = vrot.slane %v459, 2
        %v461 = vadd.f32 %v459, %v460
        %v462 = vrot.slane %v461, 1
        %v463 = vadd.f32 %v461, %v462
        %v464 = vrcp.pop %v463
        %v465 = vmul.f32 1.0, %v464
        %467 = vbcast.lane.b32.xlu0 %v465, 256
        %v468 = vpop.permute.xlu0 %467
        %v469 = vmul.f32 %v366, %v468
        %v471 = vsel %vm446, %v456, 0
        %473 = vmatprep.subr.mxu0 0.0
        %474 = vmatpush1.msra.mxu0 %v469
        %475 = vmatprep.subr.mxu0 0.0
        %476 = vmatpush1.msra.mxu0 0.0
        %477 = vmatprep.subr.mxu0 0.0
        %478 = vmatpush1.msra.mxu0 0.0
        %479 = vmatprep.subr.mxu0 0.0
        %480 = vmatpush1.msra.mxu0 0.0
        %481 = vmatprep.subr.mxu0 0.0
        %482 = vmatpush1.msra.mxu0 0.0
        %483 = vmatprep.subr.mxu0 0.0
        %484 = vmatpush1.msra.mxu0 0.0
        %485 = vmatprep.subr.mxu0 0.0
        %486 = vmatpush1.msra.mxu0 0.0
        %487 = vmatprep.subr.mxu0 0.0
        %488 = vmatpush1.msra.mxu0 0.0
        %489 = vmatprep.subr.mxu0 0.0
        %490 = vmatpush1.msra.mxu0 0.0
        %491 = vmatprep.subr.mxu0 0.0
        %492 = vmatpush1.msra.mxu0 0.0
        %493 = vmatprep.subr.mxu0 0.0
        %494 = vmatpush1.msra.mxu0 0.0
        %495 = vmatprep.subr.mxu0 0.0
        %496 = vmatpush1.msra.mxu0 0.0
        %497 = vmatprep.subr.mxu0 0.0
        %498 = vmatpush1.msra.mxu0 0.0
        %499 = vmatprep.subr.mxu0 0.0
        %500 = vmatpush1.msra.mxu0 0.0
        %501 = vmatprep.subr.mxu0 0.0
        %502 = vmatpush1.msra.mxu0 0.0
        %503 = vmatprep.subr.mxu0 0.0
        %504 = vmatpush1.msra.mxu0 0.0
        %505 = vmatprep.subr.mxu0 0.0
        %506 = vmatpush1.msra.mxu0 0.0
        %507 = vmatprep.subr.mxu0 0.0
        %508 = vmatpush1.msra.mxu0 0.0
        %509 = vmatprep.subr.mxu0 0.0
        %510 = vmatpush1.msra.mxu0 0.0
        %511 = vmatprep.subr.mxu0 0.0
        %512 = vmatpush1.msra.mxu0 0.0
        %513 = vmatprep.subr.mxu0 0.0
        %514 = vmatpush1.msra.mxu0 0.0
        %515 = vmatprep.subr.mxu0 0.0
        %516 = vmatpush1.msra.mxu0 0.0
        %517 = vmatprep.subr.mxu0 0.0
        %518 = vmatpush1.msra.mxu0 0.0
        %519 = vmatprep.subr.mxu0 0.0
        %520 = vmatpush1.msra.mxu0 0.0
        %521 = vmatprep.subr.mxu0 0.0
        %522 = vmatpush1.msra.mxu0 0.0
        %523 = vmatprep.subr.mxu0 0.0
        %524 = vmatpush1.msra.mxu0 0.0
        %525 = vmatprep.subr.mxu0 0.0
        %526 = vmatpush1.msra.mxu0 0.0
        %527 = vmatprep.subr.mxu0 0.0
        %528 = vmatpush1.msra.mxu0 0.0
        %529 = vmatprep.subr.mxu0 0.0
        %530 = vmatpush1.msra.mxu0 0.0
        %531 = vmatprep.subr.mxu0 0.0
        %532 = vmatpush1.msra.mxu0 0.0
        %533 = vmatprep.subr.mxu0 0.0
        %534 = vmatpush1.msra.mxu0 0.0
        %535 = vmatprep.subr.mxu0 0.0
        %536 = vmatpush1.msra.mxu0 0.0
        %537 = vmatprep.mubr.f32.mxu0 0.0
        %538 = vmatmul.mubr.f32.gmra.mrb[0].mxu0 %v471
        %v539 = vpop.f32.mrb[0].mxu0
        %v540 = vadd.f32 0.0, %v539
        %v541 = vpop.f32.mrb[0].mxu0
        %542 = vdwg.mxu0
        %543 = vst.msk [vmem:[%s134] sm:$0xff] %vm369, %v540
        %s544 = sand.u32 %s71, 1
        %s545 = scalar_lea.sflag [#allocation3], %s544
        %s546 = sand.u32 %s71, 1
        %s547 = smul.addr %s546, 8
        %s548 = scalar_lea.vmem [#allocation2], %s547
        // Predicated region
        $region29: #{tpu_custom_call.1} parent=27 // pred_check
          %p549 = pneg %p81
        $region30: #{tpu_custom_call.1} parent=27 // pred_check_branch
          %551 = sbr.rel (%p549) target = $region32
        $region31: #{tpu_custom_call.1} parent=27 // pred_region
          %s553 = ssub.s32 128, 128
          %554 = vsyncadd %s545, %s553
          %s555 = smul.addr %s16, 128
          %s556 = scalar_lea.hbm %s2, %s555
          %s558 = sshll.u32 %s548, 4
          %s559 = int_to_ptr.vmem [resolvable:$true] %s558
          %561 = dma.vmem_to_hbm [thread:$0]  %s559, 128, %s556, %s545
        $region32: #{tpu_custom_call.1} parent=27 // pred_fallthru
          _
      $region28: #{tpu_custom_call.1} parent=5 // pred_fallthru
        _
      %p562 = scmp.le.s32.totalorder 2, %s11
      // Predicated region
      $region33: #{tpu_custom_call.1} parent=5 // pred_check
        %p563 = pneg %p562
      $region34: #{tpu_custom_call.1} parent=5 // pred_check_branch
        %565 = sbr.rel (%p563) target = $region36
      $region35: #{tpu_custom_call.1} parent=5 // pred_region
        %s566 = ssub.s32 %s11, 2
        // Predicated region
        $region37: #{tpu_custom_call.1} parent=35 // pred_check
          %p567 = pneg %p87
        $region38: #{tpu_custom_call.1} parent=35 // pred_check_branch
          %569 = sbr.rel (%p567) target = $region40
        $region39: #{tpu_custom_call.1} parent=35 // pred_region
          %s570 = sand.u32 %s72, 1
          %s571 = scalar_lea.sflag [#allocation3], %s570
          %s572 = sand.u32 %s72, 1
          %s573 = smul.addr %s572, 8
          %s574 = scalar_lea.vmem [#allocation2], %s573
          %575 = dma.done %s571, 128
        $region40: #{tpu_custom_call.1} parent=35 // pred_fallthru
          _
      $region36: #{tpu_custom_call.1} parent=5 // pred_fallthru
        _
    $region6: #{tpu_custom_call.1} parent=1 // loop_footer
      %s15 = sadd.s32 1, %s11
    $region7: #{tpu_custom_call.1} parent=1 // loop_footer_branch
      %10 = sbr.rel target = $region3
    $region8: #{tpu_custom_call.1} parent=1 // loop_exit
      _
    %576 = vsyncpa [#allocation3], 1
    %s577 = scalar_lea.sflag [#allocation3], 1
    %578 = vsyncpa %s577, 1

</llo_original>
